<compile_context>
chip_gen: v6e
topology: v6e:2x2x1
jax: 0.10.0
libtpu: 0.0.40
codegen_flags: <defaults>
</compile_context>

<pallas_src>
import functools

import jax
import jax.numpy as jnp
from jax.experimental import pallas as pl
from jax.experimental.pallas import tpu as pltpu


def _lightgcn_fused_kernel(adj_ref, ebds_ref, out_ref, *, num_layers):
    """out[:, blk] = sum_{l=0..L} (adj^l @ ebds)[:, blk], fully VMEM-resident."""
    adj = adj_ref[...]                     # (N, N) bf16, resident across the grid
    x = ebds_ref[...]                      # (N, Dt) f32 layer-0 embeddings
    out_ref[...] = x                       # layer-0 term; accumulate in VMEM output
    # num_layers is small and static -> unrolled at trace time.
    for _ in range(num_layers):
        # bf16 operands (native MXU rate on v6e/v7x), f32 accumulation.
        x = jnp.dot(adj, x.astype(jnp.bfloat16),
                    preferred_element_type=jnp.float32)
        out_ref[...] += x


def _d_tile(D):
    """Column-block width: lane-dense, and >=2 blocks when D allows a v7x split."""
    if D <= 128:
        return D                    # single block; 64-lane split would mask stores
    if D % 256 == 0 and D >= 512:
        return 256                  # full 256-wide MXU output AND >=2 parallel blocks
    if D % 128 == 0:
        return 128                  # engage both v7x TensorCores via parallel D axis
    return D


@functools.partial(jax.jit, static_argnames=("num_layers",), donate_argnums=(1,))
def lightgcn_forward(adj, ebds, num_layers):
    """LightGCN forward: sum_{l=0..num_layers} adj^l @ ebds (one fused Pallas call)."""
    N, K = adj.shape
    N2, D = ebds.shape
    assert N == K == N2, "adj must be (N, N) and ebds (N, D)"
    # Layout sanity: lane dim a multiple of 128, sublane dims multiples of 8,
    # so all loads/stores are unmasked and lane-dense.
    assert D % 128 == 0, "embedding dim should be a multiple of 128"
    assert N % 8 == 0, "node count should be a multiple of 8"

    # adj is static across training steps; callers should pre-cast / hoist the
    # bf16 copy (the __main__ driver does).  astype is a no-op if already bf16.
    adj = adj.astype(jnp.bfloat16)
    ebds = ebds.astype(jnp.float32)

    Dt = _d_tile(D)
    grid = (D // Dt,)

    adj_bytes = N * N * 2            # bf16 adjacency, resident
    blk_bytes = N * Dt * 4           # one f32 embedding / output column block
    # adj (possibly double-buffered) + double-buffered ebds/out blocks
    # + headroom for in-kernel temporaries.  ~9 MiB at the toy size, far under
    # every generation's scoped default, and documents the true footprint.
    vmem_limit = 2 * adj_bytes + 4 * blk_bytes + (8 << 20)

    cost = pl.CostEstimate(
        flops=2 * num_layers * N * N * D,
        transcendentals=0,
        bytes_accessed=adj_bytes + N * D * 4 + N * D * 4,   # adj + ebds + out
    )

    kernel = functools.partial(_lightgcn_fused_kernel, num_layers=num_layers)

    return pl.pallas_call(
        kernel,
        out_shape=jax.ShapeDtypeStruct((N, D), jnp.float32),
        grid_spec=pltpu.PrefetchScalarGridSpec(
            num_scalar_prefetch=0,
            grid=grid,
            in_specs=[
                pl.BlockSpec((N, N), lambda j: (0, 0)),    # adj, resident across blocks
                pl.BlockSpec((N, Dt), lambda j: (0, j)),   # layer-0 embedding columns
            ],
            out_specs=pl.BlockSpec((N, Dt), lambda j: (0, j)),
        ),
        # Output reuses ebds' HBM buffer (same shape/dtype; each ebds block is
        # fully read before its output block is written back).  Caller donates.
        input_output_aliases={1: 0},
        compiler_params=pltpu.CompilerParams(
            dimension_semantics=("parallel",),   # exchange-free D split (v7x 2 TCs)
            vmem_limit_bytes=vmem_limit,
        ),
        cost_estimate=cost,
    )(adj, ebds)


if __name__ == "__main__":
    # Small shapes consistent with the module: N nodes, D-dim mobility features.
    N, D = 256, 128
    NUM_LAYERS = 3

    key = jax.random.PRNGKey(0)
    k_feat, k_adj = jax.random.split(key)

    # Deterministic "parameter" init (all_mob_features) and a dense,
    # row-normalized adjacency standing in for the sparse adj.
    all_mob_features = jax.random.normal(k_feat, (N, D), dtype=jnp.float32)
    raw = jax.random.uniform(k_adj, (N, N), dtype=jnp.float32)
    adj = raw / jnp.sum(raw, axis=1, keepdims=True)

    # Pure-JAX reference of the forward semantics — computed BEFORE the kernel
    # call because ebds (all_mob_features) is donated into the kernel output.
    e = all_mob_features
    ref = all_mob_features
    for _ in range(NUM_LAYERS):
        e = adj @ e
        ref = ref + e
    ref = jax.block_until_ready(ref)

    # adj is static across steps: cast to bf16 once, outside the jitted call.
    adj_bf16 = adj.astype(jnp.bfloat16)

    out = lightgcn_forward(adj_bf16, all_mob_features, NUM_LAYERS)
    out = jax.block_until_ready(out)

    assert out.shape == (N, D)
    # bf16 operands (== default TPU matmul operand precision) with f32 accumulation.
    assert jnp.allclose(out, ref, atol=2e-2, rtol=2e-2)

    print("KERNEL_OK")
</pallas_src>

<mosaic_0001>
module attributes {stable_mosaic.version = 11 : i64} {
  func.func @_lightgcn_fused_kernel(%arg0: i32, %arg1: memref<256x256xbf16, #tpu.memory_space<vmem>>, %arg2: memref<256x128xf32, #tpu.memory_space<vmem>>, %arg3: memref<256x128xf32, #tpu.memory_space<vmem>>) attributes {dimension_semantics = [#tpu.dimension_semantics<parallel>], iteration_bounds = array<i64: 1>, scalar_prefetch = 0 : i64, scratch_operands = 0 : i64, tpu.core_type = #tpu.core_type<tc>, window_params = [{pipeline_mode = #tpu.pipeline_mode<synchronous>, transform_indices = @transform_0, window_bounds = array<i64: 256, 256>}, {transform_indices = @transform_1, window_bounds = array<i64: 256, 128>}, {transform_indices = @transform_2, window_bounds = array<i64: 256, 128>}]} {
    %c0 = arith.constant 0 : index
    %c0_0 = arith.constant 0 : index
    %0 = vector.load %arg1[%c0, %c0_0] : memref<256x256xbf16, #tpu.memory_space<vmem>>, vector<256x256xbf16>
    %c0_1 = arith.constant 0 : index
    %c0_2 = arith.constant 0 : index
    %1 = vector.load %arg2[%c0_1, %c0_2] : memref<256x128xf32, #tpu.memory_space<vmem>>, vector<256x128xf32>
    %c0_3 = arith.constant 0 : index
    %c0_4 = arith.constant 0 : index
    %2 = vector.load %arg3[%c0_3, %c0_4] : memref<256x128xf32, #tpu.memory_space<vmem>>, vector<256x128xf32>
    tpu.vector_store %arg3[%c0_3, %c0_4], %1 {strides = array<i32>} : memref<256x128xf32, #tpu.memory_space<vmem>>, vector<256x128xf32>,
    %3 = arith.truncf %1 : vector<256x128xf32> to vector<256x128xbf16>
    %cst = arith.constant dense<0.000000e+00> : vector<256x128xf32>
    %4 = tpu.matmul %0, %3, %cst {dimension_numbers = #tpu.dot_dimension_numbers<[1], [0], [0], [1], [0, 0, 1, 1], [], []>} : vector<256x256xbf16>, vector<256x128xbf16>, vector<256x128xf32> -> vector<256x128xf32>
    %c0_5 = arith.constant 0 : index
    %c0_6 = arith.constant 0 : index
    %5 = vector.load %arg3[%c0_5, %c0_6] : memref<256x128xf32, #tpu.memory_space<vmem>>, vector<256x128xf32>
    %6 = arith.addf %5, %4 : vector<256x128xf32>
    %c0_7 = arith.constant 0 : index
    %c0_8 = arith.constant 0 : index
    %7 = vector.load %arg3[%c0_7, %c0_8] : memref<256x128xf32, #tpu.memory_space<vmem>>, vector<256x128xf32>
    tpu.vector_store %arg3[%c0_7, %c0_8], %6 {strides = array<i32>} : memref<256x128xf32, #tpu.memory_space<vmem>>, vector<256x128xf32>,
    %8 = arith.truncf %4 : vector<256x128xf32> to vector<256x128xbf16>
    %cst_9 = arith.constant dense<0.000000e+00> : vector<256x128xf32>
    %9 = tpu.matmul %0, %8, %cst_9 {dimension_numbers = #tpu.dot_dimension_numbers<[1], [0], [0], [1], [0, 0, 1, 1], [], []>} : vector<256x256xbf16>, vector<256x128xbf16>, vector<256x128xf32> -> vector<256x128xf32>
    %c0_10 = arith.constant 0 : index
    %c0_11 = arith.constant 0 : index
    %10 = vector.load %arg3[%c0_10, %c0_11] : memref<256x128xf32, #tpu.memory_space<vmem>>, vector<256x128xf32>
    %11 = arith.addf %10, %9 : vector<256x128xf32>
    %c0_12 = arith.constant 0 : index
    %c0_13 = arith.constant 0 : index
    %12 = vector.load %arg3[%c0_12, %c0_13] : memref<256x128xf32, #tpu.memory_space<vmem>>, vector<256x128xf32>
    tpu.vector_store %arg3[%c0_12, %c0_13], %11 {strides = array<i32>} : memref<256x128xf32, #tpu.memory_space<vmem>>, vector<256x128xf32>,
    %13 = arith.truncf %9 : vector<256x128xf32> to vector<256x128xbf16>
    %cst_14 = arith.constant dense<0.000000e+00> : vector<256x128xf32>
    %14 = tpu.matmul %0, %13, %cst_14 {dimension_numbers = #tpu.dot_dimension_numbers<[1], [0], [0], [1], [0, 0, 1, 1], [], []>} : vector<256x256xbf16>, vector<256x128xbf16>, vector<256x128xf32> -> vector<256x128xf32>
    %c0_15 = arith.constant 0 : index
    %c0_16 = arith.constant 0 : index
    %15 = vector.load %arg3[%c0_15, %c0_16] : memref<256x128xf32, #tpu.memory_space<vmem>>, vector<256x128xf32>
    %16 = arith.addf %15, %14 : vector<256x128xf32>
    %c0_17 = arith.constant 0 : index
    %c0_18 = arith.constant 0 : index
    %17 = vector.load %arg3[%c0_17, %c0_18] : memref<256x128xf32, #tpu.memory_space<vmem>>, vector<256x128xf32>
    tpu.vector_store %arg3[%c0_17, %c0_18], %16 {strides = array<i32>} : memref<256x128xf32, #tpu.memory_space<vmem>>, vector<256x128xf32>,
    return
  }
  func.func @transform_0(%arg0: i32) -> (i32, i32) {
    %c0_i32 = arith.constant 0 : i32
    %c0_i32_0 = arith.constant 0 : i32
    %c0_i32_1 = arith.constant 0 : i32
    return %c0_i32, %c0_i32_0 : i32, i32
  }
  func.func @transform_1(%arg0: i32) -> (i32, i32) {
    %c0_i32 = arith.constant 0 : i32
    %c0_i32_0 = arith.constant 0 : i32
    return %c0_i32, %arg0 : i32, i32
  }
  func.func @transform_2(%arg0: i32) -> (i32, i32) {
    %c0_i32 = arith.constant 0 : i32
    %c0_i32_0 = arith.constant 0 : i32
    return %c0_i32, %arg0 : i32, i32
  }
}

</mosaic_0001>

<llo_original>
// kernel: lightgcn_forward.1
$region0: #{lightgcn_forward.1}
  #allocation0 [shape = 'u32[]', space=smem, size = 0x4, offset = 0x4, fixed_abs, tag = 'smem constant byte address 0x4 - core index']
  #allocation1 [shape = 'u32[144,128]{1,0:T(1,128)}', space=vmem, size = 0x12000, scoped, tag = 'internal scratch']
  %s0 = inlined_call_operand.hbm [shape: bf16[256,256], index: 0, kind: input, shape index: {}]
  %s1 = inlined_call_operand.hbm [shape: f32[256,128], index: 1, kind: input, shape index: {}, may-alias: {1,2}]
  %s2 = inlined_call_operand.hbm [shape: f32[256,128], index: 2, kind: output, shape index: {}, may-alias: {1,2}]
  %s3 = sld [smem:[#allocation0]]
  $region26: #{lightgcn_forward.1} parent=0
    _
  %s5 = ssub.s32 1, %s3
  %s6 = scalar_select 0, %s5, %s3
  $region1: #{lightgcn_forward.1} parent=0
    #allocation2 [shape = 'u8[131072]{0}', space=vmem, size = 0x20000, scoped, tag = 'input window, operand 0, single buffered']
    #allocation3 [shape = 's32[1]{0}', space=sflag, size = 0x4, scoped, tag = 'scoped memory for lightgcn_forward.1']
    #allocation4 [shape = 's32[1]{0}', space=sflag, size = 0x4, scoped, tag = 'scoped memory for lightgcn_forward.1']
    #allocation5 [shape = 'u8[131072]{0}', space=vmem, size = 0x20000, scoped, tag = 'input window, operand 1, single buffered']
    #allocation6 [shape = 's32[1]{0}', space=sflag, size = 0x4, scoped, tag = 'scoped memory for lightgcn_forward.1']
    #allocation7 [shape = 'u8[131072]{0}', space=vmem, size = 0x20000, scoped, tag = 'output window, operand 0, single buffered']
    %7 = vsyncpa [#allocation3], 0
    %8 = vsyncpa [#allocation6], 0
    %9 = vsyncpa [#allocation4], 0
    // Predicated region
    $region2: #{lightgcn_forward.1} parent=1 // pred_check
      _
    $region3: #{lightgcn_forward.1} parent=1 // pred_check_branch
      %11 = sbr.rel (0) target = $region5
    $region4: #{lightgcn_forward.1} parent=1 // pred_region
      %s13 = ssub.s32 4096, 4096
      %14 = vsyncadd [#allocation3], %s13
      %s15 = sshll.u32 [#allocation2], 4
      %s16 = int_to_ptr.vmem [resolvable:$true] %s15
      %21 = dma.hbm_to_vmem [thread:$0]  %s0, 4096, %s16, [#allocation3], 128, 128, 8
    $region5: #{lightgcn_forward.1} parent=1 // pred_fallthru
      _
    // Predicated region
    $region6: #{lightgcn_forward.1} parent=1 // pred_check
      _
    $region7: #{lightgcn_forward.1} parent=1 // pred_check_branch
      %23 = sbr.rel (0) target = $region9
    $region8: #{lightgcn_forward.1} parent=1 // pred_region
      %s25 = ssub.s32 4096, 4096
      %26 = vsyncadd [#allocation6], %s25
      %s27 = sshll.u32 [#allocation5], 4
      %s28 = int_to_ptr.vmem [resolvable:$true] %s27
      %33 = dma.hbm_to_vmem [thread:$0]  %s1, 4096, %s28, [#allocation6], 128, 128, 8
    $region9: #{lightgcn_forward.1} parent=1 // pred_fallthru
      _
    // Predicated region
    $region10: #{lightgcn_forward.1} parent=1 // pred_check
      _
    $region11: #{lightgcn_forward.1} parent=1 // pred_check_branch
      %35 = sbr.rel (0) target = $region13
    $region12: #{lightgcn_forward.1} parent=1 // pred_region
      %36 = dma.done [#allocation3], 4096
    $region13: #{lightgcn_forward.1} parent=1 // pred_fallthru
      _
    // Predicated region
    $region14: #{lightgcn_forward.1} parent=1 // pred_check
      _
    $region15: #{lightgcn_forward.1} parent=1 // pred_check_branch
      %38 = sbr.rel (0) target = $region17
    $region16: #{lightgcn_forward.1} parent=1 // pred_region
      %39 = dma.done [#allocation6], 4096
    $region17: #{lightgcn_forward.1} parent=1 // pred_fallthru
      _
    %v41 = vld [vmem:[#allocation2] sm:$0xff]
    %v42 = vld [vmem:[#allocation2 + $0x8] sm:$0xff]
    %v43 = vld [vmem:[#allocation2 + $0x10] sm:$0xff]
    %v44 = vld [vmem:[#allocation2 + $0x18] sm:$0xff]
    %v45 = vld [vmem:[#allocation2 + $0x20] sm:$0xff]
    %v46 = vld [vmem:[#allocation2 + $0x28] sm:$0xff]
    %v47 = vld [vmem:[#allocation2 + $0x30] sm:$0xff]
    %v48 = vld [vmem:[#allocation2 + $0x38] sm:$0xff]
    %v49 = vld [vmem:[#allocation2 + $0x40] sm:$0xff]
    %v50 = vld [vmem:[#allocation2 + $0x48] sm:$0xff]
    %v51 = vld [vmem:[#allocation2 + $0x50] sm:$0xff]
    %v52 = vld [vmem:[#allocation2 + $0x58] sm:$0xff]
    %v53 = vld [vmem:[#allocation2 + $0x60] sm:$0xff]
    %v54 = vld [vmem:[#allocation2 + $0x68] sm:$0xff]
    %v55 = vld [vmem:[#allocation2 + $0x70] sm:$0xff]
    %v56 = vld [vmem:[#allocation2 + $0x78] sm:$0xff]
    %v57 = vld [vmem:[#allocation2 + $0x80] sm:$0xff]
    %v58 = vld [vmem:[#allocation2 + $0x88] sm:$0xff]
    %v59 = vld [vmem:[#allocation2 + $0x90] sm:$0xff]
    %v60 = vld [vmem:[#allocation2 + $0x98] sm:$0xff]
    %v61 = vld [vmem:[#allocation2 + $0xa0] sm:$0xff]
    %v62 = vld [vmem:[#allocation2 + $0xa8] sm:$0xff]
    %v63 = vld [vmem:[#allocation2 + $0xb0] sm:$0xff]
    %v64 = vld [vmem:[#allocation2 + $0xb8] sm:$0xff]
    %v65 = vld [vmem:[#allocation2 + $0xc0] sm:$0xff]
    %v66 = vld [vmem:[#allocation2 + $0xc8] sm:$0xff]
    %v67 = vld [vmem:[#allocation2 + $0xd0] sm:$0xff]
    %v68 = vld [vmem:[#allocation2 + $0xd8] sm:$0xff]
    %v69 = vld [vmem:[#allocation2 + $0xe0] sm:$0xff]
    %v70 = vld [vmem:[#allocation2 + $0xe8] sm:$0xff]
    %v71 = vld [vmem:[#allocation2 + $0xf0] sm:$0xff]
    %v72 = vld [vmem:[#allocation2 + $0xf8] sm:$0xff]
    %v73 = vld [vmem:[#allocation5] sm:$0xff]
    %v74 = vld [vmem:[#allocation5 + $0x8] sm:$0xff]
    %v75 = vld [vmem:[#allocation5 + $0x10] sm:$0xff]
    %v76 = vld [vmem:[#allocation5 + $0x18] sm:$0xff]
    %v77 = vld [vmem:[#allocation5 + $0x20] sm:$0xff]
    %v78 = vld [vmem:[#allocation5 + $0x28] sm:$0xff]
    %v79 = vld [vmem:[#allocation5 + $0x30] sm:$0xff]
    %v80 = vld [vmem:[#allocation5 + $0x38] sm:$0xff]
    %v81 = vld [vmem:[#allocation5 + $0x40] sm:$0xff]
    %v82 = vld [vmem:[#allocation5 + $0x48] sm:$0xff]
    %v83 = vld [vmem:[#allocation5 + $0x50] sm:$0xff]
    %v84 = vld [vmem:[#allocation5 + $0x58] sm:$0xff]
    %v85 = vld [vmem:[#allocation5 + $0x60] sm:$0xff]
    %v86 = vld [vmem:[#allocation5 + $0x68] sm:$0xff]
    %v87 = vld [vmem:[#allocation5 + $0x70] sm:$0xff]
    %v88 = vld [vmem:[#allocation5 + $0x78] sm:$0xff]
    %v89 = vld [vmem:[#allocation5 + $0x80] sm:$0xff]
    %v90 = vld [vmem:[#allocation5 + $0x88] sm:$0xff]
    %v91 = vld [vmem:[#allocation5 + $0x90] sm:$0xff]
    %v92 = vld [vmem:[#allocation5 + $0x98] sm:$0xff]
    %v93 = vld [vmem:[#allocation5 + $0xa0] sm:$0xff]
    %v94 = vld [vmem:[#allocation5 + $0xa8] sm:$0xff]
    %v95 = vld [vmem:[#allocation5 + $0xb0] sm:$0xff]
    %v96 = vld [vmem:[#allocation5 + $0xb8] sm:$0xff]
    %v97 = vld [vmem:[#allocation5 + $0xc0] sm:$0xff]
    %v98 = vld [vmem:[#allocation5 + $0xc8] sm:$0xff]
    %v99 = vld [vmem:[#allocation5 + $0xd0] sm:$0xff]
    %v100 = vld [vmem:[#allocation5 + $0xd8] sm:$0xff]
    %v101 = vld [vmem:[#allocation5 + $0xe0] sm:$0xff]
    %v102 = vld [vmem:[#allocation5 + $0xe8] sm:$0xff]
    %v103 = vld [vmem:[#allocation5 + $0xf0] sm:$0xff]
    %v104 = vld [vmem:[#allocation5 + $0xf8] sm:$0xff]
    %105 = vst [vmem:[#allocation7] sm:$0xff] %v73
    %106 = vst [vmem:[#allocation7 + $0x8] sm:$0xff] %v74
    %107 = vst [vmem:[#allocation7 + $0x10] sm:$0xff] %v75
    %108 = vst [vmem:[#allocation7 + $0x18] sm:$0xff] %v76
    %109 = vst [vmem:[#allocation7 + $0x20] sm:$0xff] %v77
    %110 = vst [vmem:[#allocation7 + $0x28] sm:$0xff] %v78
    %111 = vst [vmem:[#allocation7 + $0x30] sm:$0xff] %v79
    %112 = vst [vmem:[#allocation7 + $0x38] sm:$0xff] %v80
    %113 = vst [vmem:[#allocation7 + $0x40] sm:$0xff] %v81
    %114 = vst [vmem:[#allocation7 + $0x48] sm:$0xff] %v82
    %115 = vst [vmem:[#allocation7 + $0x50] sm:$0xff] %v83
    %116 = vst [vmem:[#allocation7 + $0x58] sm:$0xff] %v84
    %117 = vst [vmem:[#allocation7 + $0x60] sm:$0xff] %v85
    %118 = vst [vmem:[#allocation7 + $0x68] sm:$0xff] %v86
    %119 = vst [vmem:[#allocation7 + $0x70] sm:$0xff] %v87
    %120 = vst [vmem:[#allocation7 + $0x78] sm:$0xff] %v88
    %121 = vst [vmem:[#allocation7 + $0x80] sm:$0xff] %v89
    %122 = vst [vmem:[#allocation7 + $0x88] sm:$0xff] %v90
    %123 = vst [vmem:[#allocation7 + $0x90] sm:$0xff] %v91
    %124 = vst [vmem:[#allocation7 + $0x98] sm:$0xff] %v92
    %125 = vst [vmem:[#allocation7 + $0xa0] sm:$0xff] %v93
    %126 = vst [vmem:[#allocation7 + $0xa8] sm:$0xff] %v94
    %127 = vst [vmem:[#allocation7 + $0xb0] sm:$0xff] %v95
    %128 = vst [vmem:[#allocation7 + $0xb8] sm:$0xff] %v96
    %129 = vst [vmem:[#allocation7 + $0xc0] sm:$0xff] %v97
    %130 = vst [vmem:[#allocation7 + $0xc8] sm:$0xff] %v98
    %131 = vst [vmem:[#allocation7 + $0xd0] sm:$0xff] %v99
    %132 = vst [vmem:[#allocation7 + $0xd8] sm:$0xff] %v100
    %133 = vst [vmem:[#allocation7 + $0xe0] sm:$0xff] %v101
    %134 = vst [vmem:[#allocation7 + $0xe8] sm:$0xff] %v102
    %135 = vst [vmem:[#allocation7 + $0xf0] sm:$0xff] %v103
    %136 = vst [vmem:[#allocation7 + $0xf8] sm:$0xff] %v104
    %v137 = vpack.c.bf16 %v74, %v73
    %v138 = vpack.c.bf16 %v76, %v75
    %v139 = vpack.c.bf16 %v78, %v77
    %v140 = vpack.c.bf16 %v80, %v79
    %v141 = vpack.c.bf16 %v82, %v81
    %v142 = vpack.c.bf16 %v84, %v83
    %v143 = vpack.c.bf16 %v86, %v85
    %v144 = vpack.c.bf16 %v88, %v87
    %v145 = vpack.c.bf16 %v90, %v89
    %v146 = vpack.c.bf16 %v92, %v91
    %v147 = vpack.c.bf16 %v94, %v93
    %v148 = vpack.c.bf16 %v96, %v95
    %v149 = vpack.c.bf16 %v98, %v97
    %v150 = vpack.c.bf16 %v100, %v99
    %v151 = vpack.c.bf16 %v102, %v101
    %v152 = vpack.c.bf16 %v104, %v103
    %v185 = vunpack.c.l.b16 %v41
    %v186 = vunpack.c.h.b16 %v41
    %v187 = vunpack.c.l.b16 %v42
    %v188 = vunpack.c.h.b16 %v42
    %v189 = vunpack.c.l.b16 %v43
    %v190 = vunpack.c.h.b16 %v43
    %v191 = vunpack.c.l.b16 %v44
    %v192 = vunpack.c.h.b16 %v44
    %v193 = vunpack.c.l.b16 %v45
    %v194 = vunpack.c.h.b16 %v45
    %v195 = vunpack.c.l.b16 %v46
    %v196 = vunpack.c.h.b16 %v46
    %v197 = vunpack.c.l.b16 %v47
    %v198 = vunpack.c.h.b16 %v47
    %v199 = vunpack.c.l.b16 %v48
    %v200 = vunpack.c.h.b16 %v48
    %v201 = vunpack.c.l.b16 %v49
    %v202 = vunpack.c.h.b16 %v49
    %v203 = vunpack.c.l.b16 %v50
    %v204 = vunpack.c.h.b16 %v50
    %v205 = vunpack.c.l.b16 %v51
    %v206 = vunpack.c.h.b16 %v51
    %v207 = vunpack.c.l.b16 %v52
    %v208 = vunpack.c.h.b16 %v52
    %v209 = vunpack.c.l.b16 %v53
    %v210 = vunpack.c.h.b16 %v53
    %v211 = vunpack.c.l.b16 %v54
    %v212 = vunpack.c.h.b16 %v54
    %v213 = vunpack.c.l.b16 %v55
    %v214 = vunpack.c.h.b16 %v55
    %v215 = vunpack.c.l.b16 %v56
    %v216 = vunpack.c.h.b16 %v56
    %v217 = vunpack.c.l.b16 %v57
    %v218 = vunpack.c.h.b16 %v57
    %v219 = vunpack.c.l.b16 %v58
    %v220 = vunpack.c.h.b16 %v58
    %v221 = vunpack.c.l.b16 %v59
    %v222 = vunpack.c.h.b16 %v59
    %v223 = vunpack.c.l.b16 %v60
    %v224 = vunpack.c.h.b16 %v60
    %v225 = vunpack.c.l.b16 %v61
    %v226 = vunpack.c.h.b16 %v61
    %v227 = vunpack.c.l.b16 %v62
    %v228 = vunpack.c.h.b16 %v62
    %v229 = vunpack.c.l.b16 %v63
    %v230 = vunpack.c.h.b16 %v63
    %v231 = vunpack.c.l.b16 %v64
    %v232 = vunpack.c.h.b16 %v64
    %v233 = vunpack.c.l.b16 %v65
    %v234 = vunpack.c.h.b16 %v65
    %v235 = vunpack.c.l.b16 %v66
    %v236 = vunpack.c.h.b16 %v66
    %v237 = vunpack.c.l.b16 %v67
    %v238 = vunpack.c.h.b16 %v67
    %v239 = vunpack.c.l.b16 %v68
    %v240 = vunpack.c.h.b16 %v68
    %v241 = vunpack.c.l.b16 %v69
    %v242 = vunpack.c.h.b16 %v69
    %v243 = vunpack.c.l.b16 %v70
    %v244 = vunpack.c.h.b16 %v70
    %v245 = vunpack.c.l.b16 %v71
    %v246 = vunpack.c.h.b16 %v71
    %v247 = vunpack.c.l.b16 %v72
    %v248 = vunpack.c.h.b16 %v72
    %v249 = vpack.c.b16 %v187, %v185
    %v250 = vpack.c.b16 %v188, %v186
    %v251 = vpack.c.b16 %v191, %v189
    %v252 = vpack.c.b16 %v192, %v190
    %v253 = vpack.c.b16 %v195, %v193
    %v254 = vpack.c.b16 %v196, %v194
    %v255 = vpack.c.b16 %v199, %v197
    %v256 = vpack.c.b16 %v200, %v198
    %v257 = vpack.c.b16 %v203, %v201
    %v258 = vpack.c.b16 %v204, %v202
    %v259 = vpack.c.b16 %v207, %v205
    %v260 = vpack.c.b16 %v208, %v206
    %v261 = vpack.c.b16 %v211, %v209
    %v262 = vpack.c.b16 %v212, %v210
    %v263 = vpack.c.b16 %v215, %v213
    %v264 = vpack.c.b16 %v216, %v214
    %v265 = vpack.c.b16 %v219, %v217
    %v266 = vpack.c.b16 %v220, %v218
    %v267 = vpack.c.b16 %v223, %v221
    %v268 = vpack.c.b16 %v224, %v222
    %v269 = vpack.c.b16 %v227, %v225
    %v270 = vpack.c.b16 %v228, %v226
    %v271 = vpack.c.b16 %v231, %v229
    %v272 = vpack.c.b16 %v232, %v230
    %v273 = vpack.c.b16 %v235, %v233
    %v274 = vpack.c.b16 %v236, %v234
    %v275 = vpack.c.b16 %v239, %v237
    %v276 = vpack.c.b16 %v240, %v238
    %v277 = vpack.c.b16 %v243, %v241
    %v278 = vpack.c.b16 %v244, %v242
    %v279 = vpack.c.b16 %v247, %v245
    %v280 = vpack.c.b16 %v248, %v246
    %313 = vmatprep.subr.bf16.mxu0 0
    %314 = vmatpush1.bf16.msra.mxu0 %v144
    %315 = vmatprep.subr.bf16.mxu0 0
    %316 = vmatpush1.bf16.msra.mxu0 %v143
    %317 = vmatprep.subr.bf16.mxu0 0
    %318 = vmatpush1.bf16.msra.mxu0 %v142
    %319 = vmatprep.subr.bf16.mxu0 0
    %320 = vmatpush1.bf16.msra.mxu0 %v141
    %321 = vmatprep.subr.bf16.mxu0 0
    %322 = vmatpush1.bf16.msra.mxu0 %v140
    %323 = vmatprep.subr.bf16.mxu0 0
    %324 = vmatpush1.bf16.msra.mxu0 %v139
    %325 = vmatprep.subr.bf16.mxu0 0
    %326 = vmatpush1.bf16.msra.mxu0 %v138
    %327 = vmatprep.subr.bf16.mxu0 0
    %328 = vmatpush1.bf16.msra.mxu0 %v137
    %329 = vmatprep.subr.bf16.mxu0 0
    %330 = vmatpush2.bf16.msra.mxu0 %v152
    %331 = vmatprep.subr.bf16.mxu0 0
    %332 = vmatpush2.bf16.msra.mxu0 %v151
    %333 = vmatprep.subr.bf16.mxu0 0
    %334 = vmatpush2.bf16.msra.mxu0 %v150
    %335 = vmatprep.subr.bf16.mxu0 0
    %336 = vmatpush2.bf16.msra.mxu0 %v149
    %337 = vmatprep.subr.bf16.mxu0 0
    %338 = vmatpush2.bf16.msra.mxu0 %v148
    %339 = vmatprep.subr.bf16.mxu0 0
    %340 = vmatpush2.bf16.msra.mxu0 %v147
    %341 = vmatprep.subr.bf16.mxu0 0
    %342 = vmatpush2.bf16.msra.mxu0 %v146
    %343 = vmatprep.subr.bf16.mxu0 0
    %344 = vmatpush2.bf16.msra.mxu0 %v145
    %345 = vmatprep.mubr.bf16.mxu0 %v250
    %346 = vmatmul.mubr.bf16.gmra.mxu0 %v249
    %v347 = vpop.f32.mrf.mxu0
    %v348 = vadd.f32 0.0, %v347
    %v349 = vpop.f32.mrf.mxu0
    %v350 = vpop.f32.mrf.mxu0
    %v351 = vadd.f32 0.0, %v350
    %v352 = vpop.f32.mrf.mxu0
    %353 = vmatprep.mubr.bf16.mxu0 %v252
    %354 = vmatmul.mubr.bf16.gmra.mxu0 %v251
    %v355 = vpop.f32.mrf.mxu0
    %v356 = vadd.f32 0.0, %v355
    %v357 = vpop.f32.mrf.mxu0
    %v358 = vpop.f32.mrf.mxu0
    %v359 = vadd.f32 0.0, %v358
    %v360 = vpop.f32.mrf.mxu0
    %361 = vmatprep.mubr.bf16.mxu0 %v254
    %362 = vmatmul.mubr.bf16.gmra.mxu0 %v253
    %v363 = vpop.f32.mrf.mxu0
    %v364 = vadd.f32 0.0, %v363
    %v365 = vpop.f32.mrf.mxu0
    %v366 = vpop.f32.mrf.mxu0
    %v367 = vadd.f32 0.0, %v366
    %v368 = vpop.f32.mrf.mxu0
    %369 = vmatprep.mubr.bf16.mxu0 %v256
    %370 = vmatmul.mubr.bf16.gmra.mxu0 %v255
    %v371 = vpop.f32.mrf.mxu0
    %v372 = vadd.f32 0.0, %v371
    %v373 = vpop.f32.mrf.mxu0
    %v374 = vpop.f32.mrf.mxu0
    %v375 = vadd.f32 0.0, %v374
    %v376 = vpop.f32.mrf.mxu0
    %377 = vmatprep.mubr.bf16.mxu0 %v258
    %378 = vmatmul.mubr.bf16.gmra.mxu0 %v257
    %v379 = vpop.f32.mrf.mxu0
    %v380 = vadd.f32 0.0, %v379
    %v381 = vpop.f32.mrf.mxu0
    %v382 = vpop.f32.mrf.mxu0
    %v383 = vadd.f32 0.0, %v382
    %v384 = vpop.f32.mrf.mxu0
    %385 = vmatprep.mubr.bf16.mxu0 %v260
    %386 = vmatmul.mubr.bf16.gmra.mxu0 %v259
    %v387 = vpop.f32.mrf.mxu0
    %v388 = vadd.f32 0.0, %v387
    %v389 = vpop.f32.mrf.mxu0
    %v390 = vpop.f32.mrf.mxu0
    %v391 = vadd.f32 0.0, %v390
    %v392 = vpop.f32.mrf.mxu0
    %393 = vmatprep.mubr.bf16.mxu0 %v262
    %394 = vmatmul.mubr.bf16.gmra.mxu0 %v261
    %v395 = vpop.f32.mrf.mxu0
    %v396 = vadd.f32 0.0, %v395
    %v397 = vpop.f32.mrf.mxu0
    %v398 = vpop.f32.mrf.mxu0
    %v399 = vadd.f32 0.0, %v398
    %v400 = vpop.f32.mrf.mxu0
    %401 = vmatprep.mubr.bf16.mxu0 %v264
    %402 = vmatmul.mubr.bf16.gmra.mxu0 %v263
    %v403 = vpop.f32.mrf.mxu0
    %v404 = vadd.f32 0.0, %v403
    %v405 = vpop.f32.mrf.mxu0
    %v406 = vpop.f32.mrf.mxu0
    %v407 = vadd.f32 0.0, %v406
    %v408 = vpop.f32.mrf.mxu0
    %409 = vmatprep.mubr.bf16.mxu0 %v266
    %410 = vmatmul.mubr.bf16.gmra.mxu0 %v265
    %v411 = vpop.f32.mrf.mxu0
    %v412 = vadd.f32 0.0, %v411
    %v413 = vpop.f32.mrf.mxu0
    %v414 = vpop.f32.mrf.mxu0
    %v415 = vadd.f32 0.0, %v414
    %v416 = vpop.f32.mrf.mxu0
    %417 = vmatprep.mubr.bf16.mxu0 %v268
    %418 = vmatmul.mubr.bf16.gmra.mxu0 %v267
    %v419 = vpop.f32.mrf.mxu0
    %v420 = vadd.f32 0.0, %v419
    %v421 = vpop.f32.mrf.mxu0
    %v422 = vpop.f32.mrf.mxu0
    %v423 = vadd.f32 0.0, %v422
    %v424 = vpop.f32.mrf.mxu0
    %425 = vmatprep.mubr.bf16.mxu0 %v270
    %426 = vmatmul.mubr.bf16.gmra.mxu0 %v269
    %v427 = vpop.f32.mrf.mxu0
    %v428 = vadd.f32 0.0, %v427
    %v429 = vpop.f32.mrf.mxu0
    %v430 = vpop.f32.mrf.mxu0
    %v431 = vadd.f32 0.0, %v430
    %v432 = vpop.f32.mrf.mxu0
    %433 = vmatprep.mubr.bf16.mxu0 %v272
    %434 = vmatmul.mubr.bf16.gmra.mxu0 %v271
    %v435 = vpop.f32.mrf.mxu0
    %v436 = vadd.f32 0.0, %v435
    %v437 = vpop.f32.mrf.mxu0
    %v438 = vpop.f32.mrf.mxu0
    %v439 = vadd.f32 0.0, %v438
    %v440 = vpop.f32.mrf.mxu0
    %441 = vmatprep.mubr.bf16.mxu0 %v274
    %442 = vmatmul.mubr.bf16.gmra.mxu0 %v273
    %v443 = vpop.f32.mrf.mxu0
    %v444 = vadd.f32 0.0, %v443
    %v445 = vpop.f32.mrf.mxu0
    %v446 = vpop.f32.mrf.mxu0
    %v447 = vadd.f32 0.0, %v446
    %v448 = vpop.f32.mrf.mxu0
    %449 = vmatprep.mubr.bf16.mxu0 %v276
    %450 = vmatmul.mubr.bf16.gmra.mxu0 %v275
    %v451 = vpop.f32.mrf.mxu0
    %v452 = vadd.f32 0.0, %v451
    %v453 = vpop.f32.mrf.mxu0
    %v454 = vpop.f32.mrf.mxu0
    %v455 = vadd.f32 0.0, %v454
    %v456 = vpop.f32.mrf.mxu0
    %457 = vmatprep.mubr.bf16.mxu0 %v278
    %458 = vmatmul.mubr.bf16.gmra.mxu0 %v277
    %v459 = vpop.f32.mrf.mxu0
    %v460 = vadd.f32 0.0, %v459
    %v461 = vpop.f32.mrf.mxu0
    %v462 = vpop.f32.mrf.mxu0
    %v463 = vadd.f32 0.0, %v462
    %v464 = vpop.f32.mrf.mxu0
    %465 = vmatprep.mubr.bf16.mxu0 %v280
    %466 = vmatmul.mubr.bf16.gmra.mxu0 %v279
    %v467 = vpop.f32.mrf.mxu0
    %v468 = vadd.f32 0.0, %v467
    %v469 = vpop.f32.mrf.mxu0
    %v470 = vpop.f32.mrf.mxu0
    %v471 = vadd.f32 0.0, %v470
    %v472 = vpop.f32.mrf.mxu0
    %473 = vdwg.mxu0
    %v474 = vld [vmem:[#allocation7] sm:$0xff]
    %v475 = vld [vmem:[#allocation7 + $0x8] sm:$0xff]
    %v476 = vld [vmem:[#allocation7 + $0x10] sm:$0xff]
    %v477 = vld [vmem:[#allocation7 + $0x18] sm:$0xff]
    %v478 = vld [vmem:[#allocation7 + $0x20] sm:$0xff]
    %v479 = vld [vmem:[#allocation7 + $0x28] sm:$0xff]
    %v480 = vld [vmem:[#allocation7 + $0x30] sm:$0xff]
    %v481 = vld [vmem:[#allocation7 + $0x38] sm:$0xff]
    %v482 = vld [vmem:[#allocation7 + $0x40] sm:$0xff]
    %v483 = vld [vmem:[#allocation7 + $0x48] sm:$0xff]
    %v484 = vld [vmem:[#allocation7 + $0x50] sm:$0xff]
    %v485 = vld [vmem:[#allocation7 + $0x58] sm:$0xff]
    %v486 = vld [vmem:[#allocation7 + $0x60] sm:$0xff]
    %v487 = vld [vmem:[#allocation7 + $0x68] sm:$0xff]
    %v488 = vld [vmem:[#allocation7 + $0x70] sm:$0xff]
    %v489 = vld [vmem:[#allocation7 + $0x78] sm:$0xff]
    %v490 = vld [vmem:[#allocation7 + $0x80] sm:$0xff]
    %v491 = vld [vmem:[#allocation7 + $0x88] sm:$0xff]
    %v492 = vld [vmem:[#allocation7 + $0x90] sm:$0xff]
    %v493 = vld [vmem:[#allocation7 + $0x98] sm:$0xff]
    %v494 = vld [vmem:[#allocation7 + $0xa0] sm:$0xff]
    %v495 = vld [vmem:[#allocation7 + $0xa8] sm:$0xff]
    %v496 = vld [vmem:[#allocation7 + $0xb0] sm:$0xff]
    %v497 = vld [vmem:[#allocation7 + $0xb8] sm:$0xff]
    %v498 = vld [vmem:[#allocation7 + $0xc0] sm:$0xff]
    %v499 = vld [vmem:[#allocation7 + $0xc8] sm:$0xff]
    %v500 = vld [vmem:[#allocation7 + $0xd0] sm:$0xff]
    %v501 = vld [vmem:[#allocation7 + $0xd8] sm:$0xff]
    %v502 = vld [vmem:[#allocation7 + $0xe0] sm:$0xff]
    %v503 = vld [vmem:[#allocation7 + $0xe8] sm:$0xff]
    %v504 = vld [vmem:[#allocation7 + $0xf0] sm:$0xff]
    %v505 = vld [vmem:[#allocation7 + $0xf8] sm:$0xff]
    %v506 = vadd.f32 %v474, %v348
    %v507 = vadd.f32 %v475, %v351
    %v508 = vadd.f32 %v476, %v356
    %v509 = vadd.f32 %v477, %v359
    %v510 = vadd.f32 %v478, %v364
    %v511 = vadd.f32 %v479, %v367
    %v512 = vadd.f32 %v480, %v372
    %v513 = vadd.f32 %v481, %v375
    %v514 = vadd.f32 %v482, %v380
    %v515 = vadd.f32 %v483, %v383
    %v516 = vadd.f32 %v484, %v388
    %v517 = vadd.f32 %v485, %v391
    %v518 = vadd.f32 %v486, %v396
    %v519 = vadd.f32 %v487, %v399
    %v520 = vadd.f32 %v488, %v404
    %v521 = vadd.f32 %v489, %v407
    %v522 = vadd.f32 %v490, %v412
    %v523 = vadd.f32 %v491, %v415
    %v524 = vadd.f32 %v492, %v420
    %v525 = vadd.f32 %v493, %v423
    %v526 = vadd.f32 %v494, %v428
    %v527 = vadd.f32 %v495, %v431
    %v528 = vadd.f32 %v496, %v436
    %v529 = vadd.f32 %v497, %v439
    %v530 = vadd.f32 %v498, %v444
    %v531 = vadd.f32 %v499, %v447
    %v532 = vadd.f32 %v500, %v452
    %v533 = vadd.f32 %v501, %v455
    %v534 = vadd.f32 %v502, %v460
    %v535 = vadd.f32 %v503, %v463
    %v536 = vadd.f32 %v504, %v468
    %v537 = vadd.f32 %v505, %v471
    %538 = vst [vmem:[#allocation7] sm:$0xff] %v506
    %539 = vst [vmem:[#allocation7 + $0x8] sm:$0xff] %v507
    %540 = vst [vmem:[#allocation7 + $0x10] sm:$0xff] %v508
    %541 = vst [vmem:[#allocation7 + $0x18] sm:$0xff] %v509
    %542 = vst [vmem:[#allocation7 + $0x20] sm:$0xff] %v510
    %543 = vst [vmem:[#allocation7 + $0x28] sm:$0xff] %v511
    %544 = vst [vmem:[#allocation7 + $0x30] sm:$0xff] %v512
    %545 = vst [vmem:[#allocation7 + $0x38] sm:$0xff] %v513
    %546 = vst [vmem:[#allocation7 + $0x40] sm:$0xff] %v514
    %547 = vst [vmem:[#allocation7 + $0x48] sm:$0xff] %v515
    %548 = vst [vmem:[#allocation7 + $0x50] sm:$0xff] %v516
    %549 = vst [vmem:[#allocation7 + $0x58] sm:$0xff] %v517
    %550 = vst [vmem:[#allocation7 + $0x60] sm:$0xff] %v518
    %551 = vst [vmem:[#allocation7 + $0x68] sm:$0xff] %v519
    %552 = vst [vmem:[#allocation7 + $0x70] sm:$0xff] %v520
    %553 = vst [vmem:[#allocation7 + $0x78] sm:$0xff] %v521
    %554 = vst [vmem:[#allocation7 + $0x80] sm:$0xff] %v522
    %555 = vst [vmem:[#allocation7 + $0x88] sm:$0xff] %v523
    %556 = vst [vmem:[#allocation7 + $0x90] sm:$0xff] %v524
    %557 = vst [vmem:[#allocation7 + $0x98] sm:$0xff] %v525
    %558 = vst [vmem:[#allocation7 + $0xa0] sm:$0xff] %v526
    %559 = vst [vmem:[#allocation7 + $0xa8] sm:$0xff] %v527
    %560 = vst [vmem:[#allocation7 + $0xb0] sm:$0xff] %v528
    %561 = vst [vmem:[#allocation7 + $0xb8] sm:$0xff] %v529
    %562 = vst [vmem:[#allocation7 + $0xc0] sm:$0xff] %v530
    %563 = vst [vmem:[#allocation7 + $0xc8] sm:$0xff] %v531
    %564 = vst [vmem:[#allocation7 + $0xd0] sm:$0xff] %v532
    %565 = vst [vmem:[#allocation7 + $0xd8] sm:$0xff] %v533
    %566 = vst [vmem:[#allocation7 + $0xe0] sm:$0xff] %v534
    %567 = vst [vmem:[#allocation7 + $0xe8] sm:$0xff] %v535
    %568 = vst [vmem:[#allocation7 + $0xf0] sm:$0xff] %v536
    %569 = vst [vmem:[#allocation7 + $0xf8] sm:$0xff] %v537
    %v570 = vpack.c.bf16 %v351, %v348
    %v571 = vpack.c.bf16 %v359, %v356
    %v572 = vpack.c.bf16 %v367, %v364
    %v573 = vpack.c.bf16 %v375, %v372
    %v574 = vpack.c.bf16 %v383, %v380
    %v575 = vpack.c.bf16 %v391, %v388
    %v576 = vpack.c.bf16 %v399, %v396
    %v577 = vpack.c.bf16 %v407, %v404
    %v578 = vpack.c.bf16 %v415, %v412
    %v579 = vpack.c.bf16 %v423, %v420
    %v580 = vpack.c.bf16 %v431, %v428
    %v581 = vpack.c.bf16 %v439, %v436
    %v582 = vpack.c.bf16 %v447, %v444
    %v583 = vpack.c.bf16 %v455, %v452
    %v584 = vpack.c.bf16 %v463, %v460
    %v585 = vpack.c.bf16 %v471, %v468
    %586 = vmatprep.subr.bf16.mxu0 0
    %587 = vmatpush1.bf16.msra.mxu0 %v577
    %588 = vmatprep.subr.bf16.mxu0 0
    %589 = vmatpush1.bf16.msra.mxu0 %v576
    %590 = vmatprep.subr.bf16.mxu0 0
    %591 = vmatpush1.bf16.msra.mxu0 %v575
    %592 = vmatprep.subr.bf16.mxu0 0
    %593 = vmatpush1.bf16.msra.mxu0 %v574
    %594 = vmatprep.subr.bf16.mxu0 0
    %595 = vmatpush1.bf16.msra.mxu0 %v573
    %596 = vmatprep.subr.bf16.mxu0 0
    %597 = vmatpush1.bf16.msra.mxu0 %v572
    %598 = vmatprep.subr.bf16.mxu0 0
    %599 = vmatpush1.bf16.msra.mxu0 %v571
    %600 = vmatprep.subr.bf16.mxu0 0
    %601 = vmatpush1.bf16.msra.mxu0 %v570
    %602 = vmatprep.subr.bf16.mxu0 0
    %603 = vmatpush2.bf16.msra.mxu0 %v585
    %604 = vmatprep.subr.bf16.mxu0 0
    %605 = vmatpush2.bf16.msra.mxu0 %v584
    %606 = vmatprep.subr.bf16.mxu0 0
    %607 = vmatpush2.bf16.msra.mxu0 %v583
    %608 = vmatprep.subr.bf16.mxu0 0
    %609 = vmatpush2.bf16.msra.mxu0 %v582
    %610 = vmatprep.subr.bf16.mxu0 0
    %611 = vmatpush2.bf16.msra.mxu0 %v581
    %612 = vmatprep.subr.bf16.mxu0 0
    %613 = vmatpush2.bf16.msra.mxu0 %v580
    %614 = vmatprep.subr.bf16.mxu0 0
    %615 = vmatpush2.bf16.msra.mxu0 %v579
    %616 = vmatprep.subr.bf16.mxu0 0
    %617 = vmatpush2.bf16.msra.mxu0 %v578
    %618 = vmatprep.mubr.bf16.mxu0 %v250
    %619 = vmatmul.mubr.bf16.gmra.mxu0 %v249
    %v620 = vpop.f32.mrf.mxu0
    %v621 = vadd.f32 0.0, %v620
    %v622 = vpop.f32.mrf.mxu0
    %v623 = vpop.f32.mrf.mxu0
    %v624 = vadd.f32 0.0, %v623
    %v625 = vpop.f32.mrf.mxu0
    %626 = vmatprep.mubr.bf16.mxu0 %v252
    %627 = vmatmul.mubr.bf16.gmra.mxu0 %v251
    %v628 = vpop.f32.mrf.mxu0
    %v629 = vadd.f32 0.0, %v628
    %v630 = vpop.f32.mrf.mxu0
    %v631 = vpop.f32.mrf.mxu0
    %v632 = vadd.f32 0.0, %v631
    %v633 = vpop.f32.mrf.mxu0
    %634 = vmatprep.mubr.bf16.mxu0 %v254
    %635 = vmatmul.mubr.bf16.gmra.mxu0 %v253
    %v636 = vpop.f32.mrf.mxu0
    %v637 = vadd.f32 0.0, %v636
    %v638 = vpop.f32.mrf.mxu0
    %v639 = vpop.f32.mrf.mxu0
    %v640 = vadd.f32 0.0, %v639
    %v641 = vpop.f32.mrf.mxu0
    %642 = vmatprep.mubr.bf16.mxu0 %v256
    %643 = vmatmul.mubr.bf16.gmra.mxu0 %v255
    %v644 = vpop.f32.mrf.mxu0
    %v645 = vadd.f32 0.0, %v644
    %v646 = vpop.f32.mrf.mxu0
    %v647 = vpop.f32.mrf.mxu0
    %v648 = vadd.f32 0.0, %v647
    %v649 = vpop.f32.mrf.mxu0
    %650 = vmatprep.mubr.bf16.mxu0 %v258
    %651 = vmatmul.mubr.bf16.gmra.mxu0 %v257
    %v652 = vpop.f32.mrf.mxu0
    %v653 = vadd.f32 0.0, %v652
    %v654 = vpop.f32.mrf.mxu0
    %v655 = vpop.f32.mrf.mxu0
    %v656 = vadd.f32 0.0, %v655
    %v657 = vpop.f32.mrf.mxu0
    %658 = vmatprep.mubr.bf16.mxu0 %v260
    %659 = vmatmul.mubr.bf16.gmra.mxu0 %v259
    %v660 = vpop.f32.mrf.mxu0
    %v661 = vadd.f32 0.0, %v660
    %v662 = vpop.f32.mrf.mxu0
    %v663 = vpop.f32.mrf.mxu0
    %v664 = vadd.f32 0.0, %v663
    %v665 = vpop.f32.mrf.mxu0
    %666 = vmatprep.mubr.bf16.mxu0 %v262
    %667 = vmatmul.mubr.bf16.gmra.mxu0 %v261
    %v668 = vpop.f32.mrf.mxu0
    %v669 = vadd.f32 0.0, %v668
    %v670 = vpop.f32.mrf.mxu0
    %v671 = vpop.f32.mrf.mxu0
    %v672 = vadd.f32 0.0, %v671
    %v673 = vpop.f32.mrf.mxu0
    %674 = vmatprep.mubr.bf16.mxu0 %v264
    %675 = vmatmul.mubr.bf16.gmra.mxu0 %v263
    %v676 = vpop.f32.mrf.mxu0
    %v677 = vadd.f32 0.0, %v676
    %v678 = vpop.f32.mrf.mxu0
    %v679 = vpop.f32.mrf.mxu0
    %v680 = vadd.f32 0.0, %v679
    %v681 = vpop.f32.mrf.mxu0
    %682 = vmatprep.mubr.bf16.mxu0 %v266
    %683 = vmatmul.mubr.bf16.gmra.mxu0 %v265
    %v684 = vpop.f32.mrf.mxu0
    %v685 = vadd.f32 0.0, %v684
    %v686 = vpop.f32.mrf.mxu0
    %v687 = vpop.f32.mrf.mxu0
    %v688 = vadd.f32 0.0, %v687
    %v689 = vpop.f32.mrf.mxu0
    %690 = vmatprep.mubr.bf16.mxu0 %v268
    %691 = vmatmul.mubr.bf16.gmra.mxu0 %v267
    %v692 = vpop.f32.mrf.mxu0
    %v693 = vadd.f32 0.0, %v692
    %v694 = vpop.f32.mrf.mxu0
    %v695 = vpop.f32.mrf.mxu0
    %v696 = vadd.f32 0.0, %v695
    %v697 = vpop.f32.mrf.mxu0
    %698 = vmatprep.mubr.bf16.mxu0 %v270
    %699 = vmatmul.mubr.bf16.gmra.mxu0 %v269
    %v700 = vpop.f32.mrf.mxu0
    %v701 = vadd.f32 0.0, %v700
    %v702 = vpop.f32.mrf.mxu0
    %v703 = vpop.f32.mrf.mxu0
    %v704 = vadd.f32 0.0, %v703
    %v705 = vpop.f32.mrf.mxu0
    %706 = vmatprep.mubr.bf16.mxu0 %v272
    %707 = vmatmul.mubr.bf16.gmra.mxu0 %v271
    %v708 = vpop.f32.mrf.mxu0
    %v709 = vadd.f32 0.0, %v708
    %v710 = vpop.f32.mrf.mxu0
    %v711 = vpop.f32.mrf.mxu0
    %v712 = vadd.f32 0.0, %v711
    %v713 = vpop.f32.mrf.mxu0
    %714 = vmatprep.mubr.bf16.mxu0 %v274
    %715 = vmatmul.mubr.bf16.gmra.mxu0 %v273
    %v716 = vpop.f32.mrf.mxu0
    %v717 = vadd.f32 0.0, %v716
    %v718 = vpop.f32.mrf.mxu0
    %v719 = vpop.f32.mrf.mxu0
    %v720 = vadd.f32 0.0, %v719
    %v721 = vpop.f32.mrf.mxu0
    %722 = vmatprep.mubr.bf16.mxu0 %v276
    %723 = vmatmul.mubr.bf16.gmra.mxu0 %v275
    %v724 = vpop.f32.mrf.mxu0
    %v725 = vadd.f32 0.0, %v724
    %v726 = vpop.f32.mrf.mxu0
    %v727 = vpop.f32.mrf.mxu0
    %v728 = vadd.f32 0.0, %v727
    %v729 = vpop.f32.mrf.mxu0
    %730 = vmatprep.mubr.bf16.mxu0 %v278
    %731 = vmatmul.mubr.bf16.gmra.mxu0 %v277
    %v732 = vpop.f32.mrf.mxu0
    %v733 = vadd.f32 0.0, %v732
    %v734 = vpop.f32.mrf.mxu0
    %v735 = vpop.f32.mrf.mxu0
    %v736 = vadd.f32 0.0, %v735
    %v737 = vpop.f32.mrf.mxu0
    %738 = vmatprep.mubr.bf16.mxu0 %v280
    %739 = vmatmul.mubr.bf16.gmra.mxu0 %v279
    %v740 = vpop.f32.mrf.mxu0
    %v741 = vadd.f32 0.0, %v740
    %v742 = vpop.f32.mrf.mxu0
    %v743 = vpop.f32.mrf.mxu0
    %v744 = vadd.f32 0.0, %v743
    %v745 = vpop.f32.mrf.mxu0
    %746 = vdwg.mxu0
    %v747 = vld [vmem:[#allocation7] sm:$0xff]
    %v748 = vld [vmem:[#allocation7 + $0x8] sm:$0xff]
    %v749 = vld [vmem:[#allocation7 + $0x10] sm:$0xff]
    %v750 = vld [vmem:[#allocation7 + $0x18] sm:$0xff]
    %v751 = vld [vmem:[#allocation7 + $0x20] sm:$0xff]
    %v752 = vld [vmem:[#allocation7 + $0x28] sm:$0xff]
    %v753 = vld [vmem:[#allocation7 + $0x30] sm:$0xff]
    %v754 = vld [vmem:[#allocation7 + $0x38] sm:$0xff]
    %v755 = vld [vmem:[#allocation7 + $0x40] sm:$0xff]
    %v756 = vld [vmem:[#allocation7 + $0x48] sm:$0xff]
    %v757 = vld [vmem:[#allocation7 + $0x50] sm:$0xff]
    %v758 = vld [vmem:[#allocation7 + $0x58] sm:$0xff]
    %v759 = vld [vmem:[#allocation7 + $0x60] sm:$0xff]
    %v760 = vld [vmem:[#allocation7 + $0x68] sm:$0xff]
    %v761 = vld [vmem:[#allocation7 + $0x70] sm:$0xff]
    %v762 = vld [vmem:[#allocation7 + $0x78] sm:$0xff]
    %v763 = vld [vmem:[#allocation7 + $0x80] sm:$0xff]
    %v764 = vld [vmem:[#allocation7 + $0x88] sm:$0xff]
    %v765 = vld [vmem:[#allocation7 + $0x90] sm:$0xff]
    %v766 = vld [vmem:[#allocation7 + $0x98] sm:$0xff]
    %v767 = vld [vmem:[#allocation7 + $0xa0] sm:$0xff]
    %v768 = vld [vmem:[#allocation7 + $0xa8] sm:$0xff]
    %v769 = vld [vmem:[#allocation7 + $0xb0] sm:$0xff]
    %v770 = vld [vmem:[#allocation7 + $0xb8] sm:$0xff]
    %v771 = vld [vmem:[#allocation7 + $0xc0] sm:$0xff]
    %v772 = vld [vmem:[#allocation7 + $0xc8] sm:$0xff]
    %v773 = vld [vmem:[#allocation7 + $0xd0] sm:$0xff]
    %v774 = vld [vmem:[#allocation7 + $0xd8] sm:$0xff]
    %v775 = vld [vmem:[#allocation7 + $0xe0] sm:$0xff]
    %v776 = vld [vmem:[#allocation7 + $0xe8] sm:$0xff]
    %v777 = vld [vmem:[#allocation7 + $0xf0] sm:$0xff]
    %v778 = vld [vmem:[#allocation7 + $0xf8] sm:$0xff]
    %v779 = vadd.f32 %v747, %v621
    %v780 = vadd.f32 %v748, %v624
    %v781 = vadd.f32 %v749, %v629
    %v782 = vadd.f32 %v750, %v632
    %v783 = vadd.f32 %v751, %v637
    %v784 = vadd.f32 %v752, %v640
    %v785 = vadd.f32 %v753, %v645
    %v786 = vadd.f32 %v754, %v648
    %v787 = vadd.f32 %v755, %v653
    %v788 = vadd.f32 %v756, %v656
    %v789 = vadd.f32 %v757, %v661
    %v790 = vadd.f32 %v758, %v664
    %v791 = vadd.f32 %v759, %v669
    %v792 = vadd.f32 %v760, %v672
    %v793 = vadd.f32 %v761, %v677
    %v794 = vadd.f32 %v762, %v680
    %v795 = vadd.f32 %v763, %v685
    %v796 = vadd.f32 %v764, %v688
    %v797 = vadd.f32 %v765, %v693
    %v798 = vadd.f32 %v766, %v696
    %v799 = vadd.f32 %v767, %v701
    %v800 = vadd.f32 %v768, %v704
    %v801 = vadd.f32 %v769, %v709
    %v802 = vadd.f32 %v770, %v712
    %v803 = vadd.f32 %v771, %v717
    %v804 = vadd.f32 %v772, %v720
    %v805 = vadd.f32 %v773, %v725
    %v806 = vadd.f32 %v774, %v728
    %v807 = vadd.f32 %v775, %v733
    %v808 = vadd.f32 %v776, %v736
    %v809 = vadd.f32 %v777, %v741
    %v810 = vadd.f32 %v778, %v744
    %811 = vst [vmem:[#allocation7] sm:$0xff] %v779
    %812 = vst [vmem:[#allocation7 + $0x8] sm:$0xff] %v780
    %813 = vst [vmem:[#allocation7 + $0x10] sm:$0xff] %v781
    %814 = vst [vmem:[#allocation7 + $0x18] sm:$0xff] %v782
    %815 = vst [vmem:[#allocation7 + $0x20] sm:$0xff] %v783
    %816 = vst [vmem:[#allocation7 + $0x28] sm:$0xff] %v784
    %817 = vst [vmem:[#allocation7 + $0x30] sm:$0xff] %v785
    %818 = vst [vmem:[#allocation7 + $0x38] sm:$0xff] %v786
    %819 = vst [vmem:[#allocation7 + $0x40] sm:$0xff] %v787
    %820 = vst [vmem:[#allocation7 + $0x48] sm:$0xff] %v788
    %821 = vst [vmem:[#allocation7 + $0x50] sm:$0xff] %v789
    %822 = vst [vmem:[#allocation7 + $0x58] sm:$0xff] %v790
    %823 = vst [vmem:[#allocation7 + $0x60] sm:$0xff] %v791
    %824 = vst [vmem:[#allocation7 + $0x68] sm:$0xff] %v792
    %825 = vst [vmem:[#allocation7 + $0x70] sm:$0xff] %v793
    %826 = vst [vmem:[#allocation7 + $0x78] sm:$0xff] %v794
    %827 = vst [vmem:[#allocation7 + $0x80] sm:$0xff] %v795
    %828 = vst [vmem:[#allocation7 + $0x88] sm:$0xff] %v796
    %829 = vst [vmem:[#allocation7 + $0x90] sm:$0xff] %v797
    %830 = vst [vmem:[#allocation7 + $0x98] sm:$0xff] %v798
    %831 = vst [vmem:[#allocation7 + $0xa0] sm:$0xff] %v799
    %832 = vst [vmem:[#allocation7 + $0xa8] sm:$0xff] %v800
    %833 = vst [vmem:[#allocation7 + $0xb0] sm:$0xff] %v801
    %834 = vst [vmem:[#allocation7 + $0xb8] sm:$0xff] %v802
    %835 = vst [vmem:[#allocation7 + $0xc0] sm:$0xff] %v803
    %836 = vst [vmem:[#allocation7 + $0xc8] sm:$0xff] %v804
    %837 = vst [vmem:[#allocation7 + $0xd0] sm:$0xff] %v805
    %838 = vst [vmem:[#allocation7 + $0xd8] sm:$0xff] %v806
    %839 = vst [vmem:[#allocation7 + $0xe0] sm:$0xff] %v807
    %840 = vst [vmem:[#allocation7 + $0xe8] sm:$0xff] %v808
    %841 = vst [vmem:[#allocation7 + $0xf0] sm:$0xff] %v809
    %842 = vst [vmem:[#allocation7 + $0xf8] sm:$0xff] %v810
    %v843 = vpack.c.bf16 %v624, %v621
    %v844 = vpack.c.bf16 %v632, %v629
    %v845 = vpack.c.bf16 %v640, %v637
    %v846 = vpack.c.bf16 %v648, %v645
    %v847 = vpack.c.bf16 %v656, %v653
    %v848 = vpack.c.bf16 %v664, %v661
    %v849 = vpack.c.bf16 %v672, %v669
    %v850 = vpack.c.bf16 %v680, %v677
    %v851 = vpack.c.bf16 %v688, %v685
    %v852 = vpack.c.bf16 %v696, %v693
    %v853 = vpack.c.bf16 %v704, %v701
    %v854 = vpack.c.bf16 %v712, %v709
    %v855 = vpack.c.bf16 %v720, %v717
    %v856 = vpack.c.bf16 %v728, %v725
    %v857 = vpack.c.bf16 %v736, %v733
    %v858 = vpack.c.bf16 %v744, %v741
    %859 = vmatprep.subr.bf16.mxu0 0
    %860 = vmatpush1.bf16.msra.mxu0 %v850
    %861 = vmatprep.subr.bf16.mxu0 0
    %862 = vmatpush1.bf16.msra.mxu0 %v849
    %863 = vmatprep.subr.bf16.mxu0 0
    %864 = vmatpush1.bf16.msra.mxu0 %v848
    %865 = vmatprep.subr.bf16.mxu0 0
    %866 = vmatpush1.bf16.msra.mxu0 %v847
    %867 = vmatprep.subr.bf16.mxu0 0
    %868 = vmatpush1.bf16.msra.mxu0 %v846
    %869 = vmatprep.subr.bf16.mxu0 0
    %870 = vmatpush1.bf16.msra.mxu0 %v845
    %871 = vmatprep.subr.bf16.mxu0 0
    %872 = vmatpush1.bf16.msra.mxu0 %v844
    %873 = vmatprep.subr.bf16.mxu0 0
    %874 = vmatpush1.bf16.msra.mxu0 %v843
    %875 = vmatprep.subr.bf16.mxu0 0
    %876 = vmatpush2.bf16.msra.mxu0 %v858
    %877 = vmatprep.subr.bf16.mxu0 0
    %878 = vmatpush2.bf16.msra.mxu0 %v857
    %879 = vmatprep.subr.bf16.mxu0 0
    %880 = vmatpush2.bf16.msra.mxu0 %v856
    %881 = vmatprep.subr.bf16.mxu0 0
    %882 = vmatpush2.bf16.msra.mxu0 %v855
    %883 = vmatprep.subr.bf16.mxu0 0
    %884 = vmatpush2.bf16.msra.mxu0 %v854
    %885 = vmatprep.subr.bf16.mxu0 0
    %886 = vmatpush2.bf16.msra.mxu0 %v853
    %887 = vmatprep.subr.bf16.mxu0 0
    %888 = vmatpush2.bf16.msra.mxu0 %v852
    %889 = vmatprep.subr.bf16.mxu0 0
    %890 = vmatpush2.bf16.msra.mxu0 %v851
    %891 = vmatprep.mubr.bf16.mxu0 %v250
    %892 = vmatmul.mubr.bf16.gmra.mxu0 %v249
    %v893 = vpop.f32.mrf.mxu0
    %v894 = vadd.f32 0.0, %v893
    %v895 = vpop.f32.mrf.mxu0
    %v896 = vpop.f32.mrf.mxu0
    %v897 = vadd.f32 0.0, %v896
    %v898 = vpop.f32.mrf.mxu0
    %899 = vmatprep.mubr.bf16.mxu0 %v252
    %900 = vmatmul.mubr.bf16.gmra.mxu0 %v251
    %v901 = vpop.f32.mrf.mxu0
    %v902 = vadd.f32 0.0, %v901
    %v903 = vpop.f32.mrf.mxu0
    %v904 = vpop.f32.mrf.mxu0
    %v905 = vadd.f32 0.0, %v904
    %v906 = vpop.f32.mrf.mxu0
    %907 = vmatprep.mubr.bf16.mxu0 %v254
    %908 = vmatmul.mubr.bf16.gmra.mxu0 %v253
    %v909 = vpop.f32.mrf.mxu0
    %v910 = vadd.f32 0.0, %v909
    %v911 = vpop.f32.mrf.mxu0
    %v912 = vpop.f32.mrf.mxu0
    %v913 = vadd.f32 0.0, %v912
    %v914 = vpop.f32.mrf.mxu0
    %915 = vmatprep.mubr.bf16.mxu0 %v256
    %916 = vmatmul.mubr.bf16.gmra.mxu0 %v255
    %v917 = vpop.f32.mrf.mxu0
    %v918 = vadd.f32 0.0, %v917
    %v919 = vpop.f32.mrf.mxu0
    %v920 = vpop.f32.mrf.mxu0
    %v921 = vadd.f32 0.0, %v920
    %v922 = vpop.f32.mrf.mxu0
    %923 = vmatprep.mubr.bf16.mxu0 %v258
    %924 = vmatmul.mubr.bf16.gmra.mxu0 %v257
    %v925 = vpop.f32.mrf.mxu0
    %v926 = vadd.f32 0.0, %v925
    %v927 = vpop.f32.mrf.mxu0
    %v928 = vpop.f32.mrf.mxu0
    %v929 = vadd.f32 0.0, %v928
    %v930 = vpop.f32.mrf.mxu0
    %931 = vmatprep.mubr.bf16.mxu0 %v260
    %932 = vmatmul.mubr.bf16.gmra.mxu0 %v259
    %v933 = vpop.f32.mrf.mxu0
    %v934 = vadd.f32 0.0, %v933
    %v935 = vpop.f32.mrf.mxu0
    %v936 = vpop.f32.mrf.mxu0
    %v937 = vadd.f32 0.0, %v936
    %v938 = vpop.f32.mrf.mxu0
    %939 = vmatprep.mubr.bf16.mxu0 %v262
    %940 = vmatmul.mubr.bf16.gmra.mxu0 %v261
    %v941 = vpop.f32.mrf.mxu0
    %v942 = vadd.f32 0.0, %v941
    %v943 = vpop.f32.mrf.mxu0
    %v944 = vpop.f32.mrf.mxu0
    %v945 = vadd.f32 0.0, %v944
    %v946 = vpop.f32.mrf.mxu0
    %947 = vmatprep.mubr.bf16.mxu0 %v264
    %948 = vmatmul.mubr.bf16.gmra.mxu0 %v263
    %v949 = vpop.f32.mrf.mxu0
    %v950 = vadd.f32 0.0, %v949
    %v951 = vpop.f32.mrf.mxu0
    %v952 = vpop.f32.mrf.mxu0
    %v953 = vadd.f32 0.0, %v952
    %v954 = vpop.f32.mrf.mxu0
    %955 = vmatprep.mubr.bf16.mxu0 %v266
    %956 = vmatmul.mubr.bf16.gmra.mxu0 %v265
    %v957 = vpop.f32.mrf.mxu0
    %v958 = vadd.f32 0.0, %v957
    %v959 = vpop.f32.mrf.mxu0
    %v960 = vpop.f32.mrf.mxu0
    %v961 = vadd.f32 0.0, %v960
    %v962 = vpop.f32.mrf.mxu0
    %963 = vmatprep.mubr.bf16.mxu0 %v268
    %964 = vmatmul.mubr.bf16.gmra.mxu0 %v267
    %v965 = vpop.f32.mrf.mxu0
    %v966 = vadd.f32 0.0, %v965
    %v967 = vpop.f32.mrf.mxu0
    %v968 = vpop.f32.mrf.mxu0
    %v969 = vadd.f32 0.0, %v968
    %v970 = vpop.f32.mrf.mxu0
    %971 = vmatprep.mubr.bf16.mxu0 %v270
    %972 = vmatmul.mubr.bf16.gmra.mxu0 %v269
    %v973 = vpop.f32.mrf.mxu0
    %v974 = vadd.f32 0.0, %v973
    %v975 = vpop.f32.mrf.mxu0
    %v976 = vpop.f32.mrf.mxu0
    %v977 = vadd.f32 0.0, %v976
    %v978 = vpop.f32.mrf.mxu0
    %979 = vmatprep.mubr.bf16.mxu0 %v272
    %980 = vmatmul.mubr.bf16.gmra.mxu0 %v271
    %v981 = vpop.f32.mrf.mxu0
    %v982 = vadd.f32 0.0, %v981
    %v983 = vpop.f32.mrf.mxu0
    %v984 = vpop.f32.mrf.mxu0
    %v985 = vadd.f32 0.0, %v984
    %v986 = vpop.f32.mrf.mxu0
    %987 = vmatprep.mubr.bf16.mxu0 %v274
    %988 = vmatmul.mubr.bf16.gmra.mxu0 %v273
    %v989 = vpop.f32.mrf.mxu0
    %v990 = vadd.f32 0.0, %v989
    %v991 = vpop.f32.mrf.mxu0
    %v992 = vpop.f32.mrf.mxu0
    %v993 = vadd.f32 0.0, %v992
    %v994 = vpop.f32.mrf.mxu0
    %995 = vmatprep.mubr.bf16.mxu0 %v276
    %996 = vmatmul.mubr.bf16.gmra.mxu0 %v275
    %v997 = vpop.f32.mrf.mxu0
    %v998 = vadd.f32 0.0, %v997
    %v999 = vpop.f32.mrf.mxu0
    %v1000 = vpop.f32.mrf.mxu0
    %v1001 = vadd.f32 0.0, %v1000
    %v1002 = vpop.f32.mrf.mxu0
    %1003 = vmatprep.mubr.bf16.mxu0 %v278
    %1004 = vmatmul.mubr.bf16.gmra.mxu0 %v277
    %v1005 = vpop.f32.mrf.mxu0
    %v1006 = vadd.f32 0.0, %v1005
    %v1007 = vpop.f32.mrf.mxu0
    %v1008 = vpop.f32.mrf.mxu0
    %v1009 = vadd.f32 0.0, %v1008
    %v1010 = vpop.f32.mrf.mxu0
    %1011 = vmatprep.mubr.bf16.mxu0 %v280
    %1012 = vmatmul.mubr.bf16.gmra.mxu0 %v279
    %v1013 = vpop.f32.mrf.mxu0
    %v1014 = vadd.f32 0.0, %v1013
    %v1015 = vpop.f32.mrf.mxu0
    %v1016 = vpop.f32.mrf.mxu0
    %v1017 = vadd.f32 0.0, %v1016
    %v1018 = vpop.f32.mrf.mxu0
    %1019 = vdwg.mxu0
    %v1020 = vld [vmem:[#allocation7] sm:$0xff]
    %v1021 = vld [vmem:[#allocation7 + $0x8] sm:$0xff]
    %v1022 = vld [vmem:[#allocation7 + $0x10] sm:$0xff]
    %v1023 = vld [vmem:[#allocation7 + $0x18] sm:$0xff]
    %v1024 = vld [vmem:[#allocation7 + $0x20] sm:$0xff]
    %v1025 = vld [vmem:[#allocation7 + $0x28] sm:$0xff]
    %v1026 = vld [vmem:[#allocation7 + $0x30] sm:$0xff]
    %v1027 = vld [vmem:[#allocation7 + $0x38] sm:$0xff]
    %v1028 = vld [vmem:[#allocation7 + $0x40] sm:$0xff]
    %v1029 = vld [vmem:[#allocation7 + $0x48] sm:$0xff]
    %v1030 = vld [vmem:[#allocation7 + $0x50] sm:$0xff]
    %v1031 = vld [vmem:[#allocation7 + $0x58] sm:$0xff]
    %v1032 = vld [vmem:[#allocation7 + $0x60] sm:$0xff]
    %v1033 = vld [vmem:[#allocation7 + $0x68] sm:$0xff]
    %v1034 = vld [vmem:[#allocation7 + $0x70] sm:$0xff]
    %v1035 = vld [vmem:[#allocation7 + $0x78] sm:$0xff]
    %v1036 = vld [vmem:[#allocation7 + $0x80] sm:$0xff]
    %v1037 = vld [vmem:[#allocation7 + $0x88] sm:$0xff]
    %v1038 = vld [vmem:[#allocation7 + $0x90] sm:$0xff]
    %v1039 = vld [vmem:[#allocation7 + $0x98] sm:$0xff]
    %v1040 = vld [vmem:[#allocation7 + $0xa0] sm:$0xff]
    %v1041 = vld [vmem:[#allocation7 + $0xa8] sm:$0xff]
    %v1042 = vld [vmem:[#allocation7 + $0xb0] sm:$0xff]
    %v1043 = vld [vmem:[#allocation7 + $0xb8] sm:$0xff]
    %v1044 = vld [vmem:[#allocation7 + $0xc0] sm:$0xff]
    %v1045 = vld [vmem:[#allocation7 + $0xc8] sm:$0xff]
    %v1046 = vld [vmem:[#allocation7 + $0xd0] sm:$0xff]
    %v1047 = vld [vmem:[#allocation7 + $0xd8] sm:$0xff]
    %v1048 = vld [vmem:[#allocation7 + $0xe0] sm:$0xff]
    %v1049 = vld [vmem:[#allocation7 + $0xe8] sm:$0xff]
    %v1050 = vld [vmem:[#allocation7 + $0xf0] sm:$0xff]
    %v1051 = vld [vmem:[#allocation7 + $0xf8] sm:$0xff]
    %v1052 = vadd.f32 %v1020, %v894
    %v1053 = vadd.f32 %v1021, %v897
    %v1054 = vadd.f32 %v1022, %v902
    %v1055 = vadd.f32 %v1023, %v905
    %v1056 = vadd.f32 %v1024, %v910
    %v1057 = vadd.f32 %v1025, %v913
    %v1058 = vadd.f32 %v1026, %v918
    %v1059 = vadd.f32 %v1027, %v921
    %v1060 = vadd.f32 %v1028, %v926
    %v1061 = vadd.f32 %v1029, %v929
    %v1062 = vadd.f32 %v1030, %v934
    %v1063 = vadd.f32 %v1031, %v937
    %v1064 = vadd.f32 %v1032, %v942
    %v1065 = vadd.f32 %v1033, %v945
    %v1066 = vadd.f32 %v1034, %v950
    %v1067 = vadd.f32 %v1035, %v953
    %v1068 = vadd.f32 %v1036, %v958
    %v1069 = vadd.f32 %v1037, %v961
    %v1070 = vadd.f32 %v1038, %v966
    %v1071 = vadd.f32 %v1039, %v969
    %v1072 = vadd.f32 %v1040, %v974
    %v1073 = vadd.f32 %v1041, %v977
    %v1074 = vadd.f32 %v1042, %v982
    %v1075 = vadd.f32 %v1043, %v985
    %v1076 = vadd.f32 %v1044, %v990
    %v1077 = vadd.f32 %v1045, %v993
    %v1078 = vadd.f32 %v1046, %v998
    %v1079 = vadd.f32 %v1047, %v1001
    %v1080 = vadd.f32 %v1048, %v1006
    %v1081 = vadd.f32 %v1049, %v1009
    %v1082 = vadd.f32 %v1050, %v1014
    %v1083 = vadd.f32 %v1051, %v1017
    %1084 = vst [vmem:[#allocation7] sm:$0xff] %v1052
    %1085 = vst [vmem:[#allocation7 + $0x8] sm:$0xff] %v1053
    %1086 = vst [vmem:[#allocation7 + $0x10] sm:$0xff] %v1054
    %1087 = vst [vmem:[#allocation7 + $0x18] sm:$0xff] %v1055
    %1088 = vst [vmem:[#allocation7 + $0x20] sm:$0xff] %v1056
    %1089 = vst [vmem:[#allocation7 + $0x28] sm:$0xff] %v1057
    %1090 = vst [vmem:[#allocation7 + $0x30] sm:$0xff] %v1058
    %1091 = vst [vmem:[#allocation7 + $0x38] sm:$0xff] %v1059
    %1092 = vst [vmem:[#allocation7 + $0x40] sm:$0xff] %v1060
    %1093 = vst [vmem:[#allocation7 + $0x48] sm:$0xff] %v1061
    %1094 = vst [vmem:[#allocation7 + $0x50] sm:$0xff] %v1062
    %1095 = vst [vmem:[#allocation7 + $0x58] sm:$0xff] %v1063
    %1096 = vst [vmem:[#allocation7 + $0x60] sm:$0xff] %v1064
    %1097 = vst [vmem:[#allocation7 + $0x68] sm:$0xff] %v1065
    %1098 = vst [vmem:[#allocation7 + $0x70] sm:$0xff] %v1066
    %1099 = vst [vmem:[#allocation7 + $0x78] sm:$0xff] %v1067
    %1100 = vst [vmem:[#allocation7 + $0x80] sm:$0xff] %v1068
    %1101 = vst [vmem:[#allocation7 + $0x88] sm:$0xff] %v1069
    %1102 = vst [vmem:[#allocation7 + $0x90] sm:$0xff] %v1070
    %1103 = vst [vmem:[#allocation7 + $0x98] sm:$0xff] %v1071
    %1104 = vst [vmem:[#allocation7 + $0xa0] sm:$0xff] %v1072
    %1105 = vst [vmem:[#allocation7 + $0xa8] sm:$0xff] %v1073
    %1106 = vst [vmem:[#allocation7 + $0xb0] sm:$0xff] %v1074
    %1107 = vst [vmem:[#allocation7 + $0xb8] sm:$0xff] %v1075
    %1108 = vst [vmem:[#allocation7 + $0xc0] sm:$0xff] %v1076
    %1109 = vst [vmem:[#allocation7 + $0xc8] sm:$0xff] %v1077
    %1110 = vst [vmem:[#allocation7 + $0xd0] sm:$0xff] %v1078
    %1111 = vst [vmem:[#allocation7 + $0xd8] sm:$0xff] %v1079
    %1112 = vst [vmem:[#allocation7 + $0xe0] sm:$0xff] %v1080
    %1113 = vst [vmem:[#allocation7 + $0xe8] sm:$0xff] %v1081
    %1114 = vst [vmem:[#allocation7 + $0xf0] sm:$0xff] %v1082
    %1115 = vst [vmem:[#allocation7 + $0xf8] sm:$0xff] %v1083
    // Predicated region
    $region18: #{lightgcn_forward.1} parent=1 // pred_check
      _
    $region19: #{lightgcn_forward.1} parent=1 // pred_check_branch
      %1117 = sbr.rel (0) target = $region21
    $region20: #{lightgcn_forward.1} parent=1 // pred_region
      %s1119 = ssub.s32 4096, 4096
      %1120 = vsyncadd [#allocation4], %s1119
      %s1121 = sshll.u32 [#allocation7], 4
      %s1122 = int_to_ptr.vmem [resolvable:$true] %s1121
      %1127 = dma.vmem_to_hbm [thread:$0]  %s1122, 4096, %s2, [#allocation4], 128, 128, 8
    $region21: #{lightgcn_forward.1} parent=1 // pred_fallthru
      _
    // Predicated region
    $region22: #{lightgcn_forward.1} parent=1 // pred_check
      _
    $region23: #{lightgcn_forward.1} parent=1 // pred_check_branch
      %1129 = sbr.rel (0) target = $region25
    $region24: #{lightgcn_forward.1} parent=1 // pred_region
      %1130 = dma.done [#allocation4], 4096
    $region25: #{lightgcn_forward.1} parent=1 // pred_fallthru
      _
    %1131 = vsyncpa [#allocation3], 1
    %1132 = vsyncpa [#allocation6], 1
    %1133 = vsyncpa [#allocation4], 1

</llo_original>
